<compile_context>
chip_gen: v7x
topology: tpu7x:2x2x1
jax: 0.10.0
libtpu: 0.0.40
codegen_flags: <defaults>
</compile_context>

<pallas_src>
import functools

import jax
import jax.numpy as jnp
from jax.experimental import pallas as pl
from jax.experimental.pallas import tpu as pltpu


def _round_up(v: int, m: int) -> int:
    return (v + m - 1) // m * m


def _gaussian_residual_kernel(x_ref, w1_ref, b1_ref, w2_ref, b2_ref, o_ref, *, neg_s2):
    # Matmul operands stay in their native (possibly bf16) dtype; accumulate f32.
    x = x_ref[...]
    h = jnp.dot(x, w1_ref[...], preferred_element_type=jnp.float32)
    h = h + b1_ref[...].astype(jnp.float32)

    # Gaussian activation in f32 (EUP exp; neg_s2 precomputed => 2 vmul + exp).
    a = jnp.exp(neg_s2 * h * h)

    # Second matmul: feed the MXU in the weight dtype (bf16 fast path if given).
    y = jnp.dot(a.astype(w2_ref.dtype), w2_ref[...],
                preferred_element_type=jnp.float32)
    y = y + b2_ref[...].astype(jnp.float32)

    # Residual + second Gaussian activation (f32), then store in output dtype.
    y = y + x.astype(jnp.float32)
    out = jnp.exp(neg_s2 * y * y)

    # dropout_prc = 0.0 -> nn.Identity (no-op).
    # TODO(synk): nonzero dropout would need pltpu.prng_seed/prng_random_bits + a train flag.
    o_ref[...] = out.astype(o_ref.dtype)


def gaussian_residual_layer(x, w1, b1, w2, b2, *, scale=30.0, block_rows=512,
                            target_grid_steps=8, compute_dtype=None):
    """x: [N, F]; w1, w2: [F, F] (transposed vs. torch nn.Linear); b1, b2: [1, F].

    compute_dtype: optional dtype (e.g. jnp.bfloat16) for the streamed/matmul
    operands; accumulation and activation math remain f32, output is returned
    in x's original dtype.
    """
    N, F = x.shape
    assert w1.shape == (F, F) and w2.shape == (F, F)
    assert b1.shape == (1, F) and b2.shape == (1, F)

    out_dtype = x.dtype
    if compute_dtype is not None:
        x = x.astype(compute_dtype)
        w1 = w1.astype(compute_dtype)
        w2 = w2.astype(compute_dtype)
        b1 = b1.astype(compute_dtype)
        b2 = b2.astype(compute_dtype)

    # --- pad lanes to a multiple of 128 (exact: zero-padded weight rows/cols
    #     contribute nothing to the real output lanes; padded output lanes are
    #     sliced off below). NOTE: when stacking layers, keep activations in
    #     the padded (N, F_pad) layout so this pad/slice happens once per net.
    F_pad = _round_up(max(F, 128), 128)
    if F_pad != F:
        p = F_pad - F
        x = jnp.pad(x, ((0, 0), (0, p)))
        w1 = jnp.pad(w1, ((0, p), (0, p)))
        w2 = jnp.pad(w2, ((0, p), (0, p)))
        b1 = jnp.pad(b1, ((0, 0), (0, p)))
        b2 = jnp.pad(b2, ((0, 0), (0, p)))

    # --- row tiling: no row padding. Size bm so there are >= target_grid_steps
    #     grid steps (>= ~4 per TensorCore on v7x) for pipelined DMA overlap.
    bm = min(block_rows, _round_up(pl.cdiv(N, target_grid_steps), 8))
    bm = max(bm, 8)
    grid = (pl.cdiv(N, bm),)

    kernel = functools.partial(_gaussian_residual_kernel,
                               neg_s2=-(float(scale) * float(scale)))

    x_it = jnp.dtype(x.dtype).itemsize
    w_it = jnp.dtype(w1.dtype).itemsize
    o_it = jnp.dtype(out_dtype).itemsize

    # --- cost estimate: two [bm,F]x[F,F] matmuls per row, two exp per element.
    flops = 2 * (2 * N * F_pad * F_pad)
    transcendentals = 2 * N * F_pad
    bytes_accessed = (N * F_pad * (x_it + o_it)                      # x in, out out
                      + 2 * F_pad * F_pad * w_it                     # W1, W2
                      + 2 * F_pad * w_it)                            # b1, b2

    # --- explicit VMEM budget (always set the limit: v5e scoped default is
    #     only 16 MiB). Weights/biases are single-buffered; x/out tiles are
    #     double-buffered; ~5 f32 intermediates (h, a, y, out, casts) per tile.
    weight_bytes = 2 * F_pad * F_pad * w_it + 2 * F_pad * w_it
    tile_bytes = bm * F_pad * (2 * x_it + 2 * o_it)
    interm_bytes = 5 * bm * F_pad * 4
    vmem_need = weight_bytes + tile_bytes + interm_bytes
    try:
        vmem_cap = pltpu.get_tpu_info().vmem_capacity_bytes
    except Exception:
        vmem_cap = 64 << 20  # conservative fallback: v7x per-core capacity
    vmem_limit = min(max(int(vmem_need * 5 // 4), 16 << 20), vmem_cap - (8 << 20))

    resident = dict(pipeline_mode=pl.Buffered(1))  # constant index_map -> 1 buffer

    out = pl.pallas_call(
        kernel,
        out_shape=jax.ShapeDtypeStruct((N, F_pad), out_dtype),
        grid_spec=pltpu.PrefetchScalarGridSpec(
            num_scalar_prefetch=0,
            grid=grid,
            in_specs=[
                pl.BlockSpec((bm, F_pad), lambda i: (i, 0)),                 # x tile (streamed)
                pl.BlockSpec((F_pad, F_pad), lambda i: (0, 0), **resident),  # W1 (resident)
                pl.BlockSpec((1, F_pad), lambda i: (0, 0), **resident),      # b1
                pl.BlockSpec((F_pad, F_pad), lambda i: (0, 0), **resident),  # W2 (resident)
                pl.BlockSpec((1, F_pad), lambda i: (0, 0), **resident),      # b2
            ],
            out_specs=pl.BlockSpec((bm, F_pad), lambda i: (i, 0)),
        ),
        compiler_params=pltpu.CompilerParams(
            dimension_semantics=("parallel",),
            vmem_limit_bytes=vmem_limit),
        cost_estimate=pl.CostEstimate(flops=flops,
                                      transcendentals=transcendentals,
                                      bytes_accessed=bytes_accessed),
    )(x, w1, b1, w2, b2)

    if F_pad != F:
        out = out[:, :F]
    return out


def gaussian_residual_layer_ref(x, w1, b1, w2, b2, *, scale=30.0):
    """Pure-JAX reference for correctness checking."""
    act = lambda t: jnp.exp(-jnp.square(scale * t))
    h = x @ w1 + b1
    y = act(h) @ w2 + b2
    return act(y + x)


if __name__ == "__main__":
    # Residual layer => in_features == out_features. Small demo shapes, with
    # enough rows for an 8-step pipelined grid (bm = 256).
    N = 2048         # number of coordinate samples (rows)
    F = 64           # in_features == out_features (padded to 128 lanes inside)
    scale = 30.0
    weight_init = 0.1  # Initializer.gaussian_init -> uniform(-weight_init, weight_init)

    key = jax.random.PRNGKey(0)
    kx, kw1, kb1, kw2, kb2 = jax.random.split(key, 5)

    x = jax.random.normal(kx, (N, F), dtype=jnp.float32) * 0.05

    # Deterministic synthetic parameter init mimicking uniform(-weight_init, weight_init).
    w1 = jax.random.uniform(kw1, (F, F), jnp.float32, -weight_init, weight_init)
    b1 = jax.random.uniform(kb1, (1, F), jnp.float32, -weight_init, weight_init)
    w2 = jax.random.uniform(kw2, (F, F), jnp.float32, -weight_init, weight_init)
    b2 = jax.random.uniform(kb2, (1, F), jnp.float32, -weight_init, weight_init)

    # f32 path (exact vs reference).
    out = gaussian_residual_layer(x, w1, b1, w2, b2, scale=scale)
    out = jax.block_until_ready(out)

    ref = gaussian_residual_layer_ref(x, w1, b1, w2, b2, scale=scale)
    assert out.shape == (N, F)
    assert jnp.allclose(out, ref, atol=1e-5, rtol=1e-5), "mismatch vs reference"

    # bf16 operand path (f32 accumulation/activation inside): loose sanity check.
    out_bf16 = gaussian_residual_layer(x, w1, b1, w2, b2, scale=scale,
                                       compute_dtype=jnp.bfloat16)
    out_bf16 = jax.block_until_ready(out_bf16)
    assert out_bf16.shape == (N, F)
    assert bool(jnp.all(jnp.isfinite(out_bf16))), "non-finite bf16-path output"

    print("KERNEL_OK")
</pallas_src>

<mosaic_0001>
module attributes {stable_mosaic.version = 11 : i64} {
  func.func @_gaussian_residual_kernel(%arg0: i32, %arg1: memref<256x128xf32, #tpu.memory_space<vmem>>, %arg2: memref<128x128xf32, #tpu.memory_space<vmem>>, %arg3: memref<1x128xf32, #tpu.memory_space<vmem>>, %arg4: memref<128x128xf32, #tpu.memory_space<vmem>>, %arg5: memref<1x128xf32, #tpu.memory_space<vmem>>, %arg6: memref<256x128xf32, #tpu.memory_space<vmem>>) attributes {dimension_semantics = [#tpu.dimension_semantics<parallel>], iteration_bounds = array<i64: 8>, scalar_prefetch = 0 : i64, scratch_operands = 0 : i64, tpu.core_type = #tpu.core_type<tc>, window_params = [{transform_indices = @transform_0, window_bounds = array<i64: 256, 128>}, {pipeline_mode = #tpu.pipeline_mode<synchronous>, transform_indices = @transform_1, window_bounds = array<i64: 128, 128>}, {pipeline_mode = #tpu.pipeline_mode<synchronous>, transform_indices = @transform_2, window_bounds = array<i64: 1, 128>}, {pipeline_mode = #tpu.pipeline_mode<synchronous>, transform_indices = @transform_3, window_bounds = array<i64: 128, 128>}, {pipeline_mode = #tpu.pipeline_mode<synchronous>, transform_indices = @transform_4, window_bounds = array<i64: 1, 128>}, {transform_indices = @transform_5, window_bounds = array<i64: 256, 128>}]} {
    %c0 = arith.constant 0 : index
    %c0_0 = arith.constant 0 : index
    %0 = vector.load %arg1[%c0, %c0_0] : memref<256x128xf32, #tpu.memory_space<vmem>>, vector<256x128xf32>
    %c0_1 = arith.constant 0 : index
    %c0_2 = arith.constant 0 : index
    %1 = vector.load %arg2[%c0_1, %c0_2] : memref<128x128xf32, #tpu.memory_space<vmem>>, vector<128x128xf32>
    %cst = arith.constant dense<0.000000e+00> : vector<256x128xf32>
    %2 = tpu.matmul %0, %1, %cst {dimension_numbers = #tpu.dot_dimension_numbers<[1], [0], [0], [1], [0, 0, 1, 1], [], []>} : vector<256x128xf32>, vector<128x128xf32>, vector<256x128xf32> -> vector<256x128xf32>
    %c0_3 = arith.constant 0 : index
    %c0_4 = arith.constant 0 : index
    %3 = vector.load %arg3[%c0_3, %c0_4] : memref<1x128xf32, #tpu.memory_space<vmem>>, vector<1x128xf32>
    %4 = vector.broadcast %3 : vector<1x128xf32> to vector<256x128xf32>
    %5 = arith.addf %2, %4 : vector<256x128xf32>
    %cst_5 = arith.constant -9.000000e+02 : f32
    %6 = vector.broadcast %cst_5 : f32 to vector<256x128xf32>
    %7 = arith.mulf %6, %5 : vector<256x128xf32>
    %8 = arith.mulf %7, %5 : vector<256x128xf32>
    %9 = math.exp %8 : vector<256x128xf32>
    %c0_6 = arith.constant 0 : index
    %c0_7 = arith.constant 0 : index
    %10 = vector.load %arg4[%c0_6, %c0_7] : memref<128x128xf32, #tpu.memory_space<vmem>>, vector<128x128xf32>
    %cst_8 = arith.constant dense<0.000000e+00> : vector<256x128xf32>
    %11 = tpu.matmul %9, %10, %cst_8 {dimension_numbers = #tpu.dot_dimension_numbers<[1], [0], [0], [1], [0, 0, 1, 1], [], []>} : vector<256x128xf32>, vector<128x128xf32>, vector<256x128xf32> -> vector<256x128xf32>
    %c0_9 = arith.constant 0 : index
    %c0_10 = arith.constant 0 : index
    %12 = vector.load %arg5[%c0_9, %c0_10] : memref<1x128xf32, #tpu.memory_space<vmem>>, vector<1x128xf32>
    %13 = vector.broadcast %12 : vector<1x128xf32> to vector<256x128xf32>
    %14 = arith.addf %11, %13 : vector<256x128xf32>
    %15 = arith.addf %14, %0 : vector<256x128xf32>
    %cst_11 = arith.constant -9.000000e+02 : f32
    %16 = vector.broadcast %cst_11 : f32 to vector<256x128xf32>
    %17 = arith.mulf %16, %15 : vector<256x128xf32>
    %18 = arith.mulf %17, %15 : vector<256x128xf32>
    %19 = math.exp %18 : vector<256x128xf32>
    %c0_12 = arith.constant 0 : index
    %c0_13 = arith.constant 0 : index
    %20 = vector.load %arg6[%c0_12, %c0_13] : memref<256x128xf32, #tpu.memory_space<vmem>>, vector<256x128xf32>
    tpu.vector_store %arg6[%c0_12, %c0_13], %19 {strides = array<i32>} : memref<256x128xf32, #tpu.memory_space<vmem>>, vector<256x128xf32>,
    return
  }
  func.func @transform_0(%arg0: i32) -> (i32, i32) {
    %c0_i32 = arith.constant 0 : i32
    %c0_i32_0 = arith.constant 0 : i32
    return %arg0, %c0_i32 : i32, i32
  }
  func.func @transform_1(%arg0: i32) -> (i32, i32) {
    %c0_i32 = arith.constant 0 : i32
    %c0_i32_0 = arith.constant 0 : i32
    %c0_i32_1 = arith.constant 0 : i32
    return %c0_i32, %c0_i32_0 : i32, i32
  }
  func.func @transform_2(%arg0: i32) -> (i32, i32) {
    %c0_i32 = arith.constant 0 : i32
    %c0_i32_0 = arith.constant 0 : i32
    %c0_i32_1 = arith.constant 0 : i32
    return %c0_i32, %c0_i32_0 : i32, i32
  }
  func.func @transform_3(%arg0: i32) -> (i32, i32) {
    %c0_i32 = arith.constant 0 : i32
    %c0_i32_0 = arith.constant 0 : i32
    %c0_i32_1 = arith.constant 0 : i32
    return %c0_i32, %c0_i32_0 : i32, i32
  }
  func.func @transform_4(%arg0: i32) -> (i32, i32) {
    %c0_i32 = arith.constant 0 : i32
    %c0_i32_0 = arith.constant 0 : i32
    %c0_i32_1 = arith.constant 0 : i32
    return %c0_i32, %c0_i32_0 : i32, i32
  }
  func.func @transform_5(%arg0: i32) -> (i32, i32) {
    %c0_i32 = arith.constant 0 : i32
    %c0_i32_0 = arith.constant 0 : i32
    return %arg0, %c0_i32 : i32, i32
  }
}

</mosaic_0001>

<llo_original>
// kernel: tpu_custom_call.1
$region0: #{tpu_custom_call.1}
  #allocation0 [shape = 'u32[]', space=smem, size = 0x4, offset = 0x4, fixed_abs, tag = 'smem constant byte address 0x4 - core index']
  #allocation1 [shape = 'u32[144,128]{1,0:T(1,128)}', space=vmem, size = 0x12000, scoped, tag = 'internal scratch']
  %s0 = inlined_call_operand.hbm [shape: f32[2048,128], index: 0, kind: input, shape index: {}]
  %s1 = inlined_call_operand.hbm [shape: f32[128,128], index: 1, kind: input, shape index: {}]
  %s2 = inlined_call_operand.vmem [shape: f32[1,128], index: 2, kind: input, shape index: {}]
  %s3 = inlined_call_operand.hbm [shape: f32[128,128], index: 3, kind: input, shape index: {}]
  %s4 = inlined_call_operand.vmem [shape: f32[1,128], index: 4, kind: input, shape index: {}]
  %s5 = inlined_call_operand.hbm [shape: f32[2048,128], index: 5, kind: output, shape index: {}]
  %s6 = sld [smem:[#allocation0]]
  $region65: #{tpu_custom_call.1} parent=0
    _
  %s8 = ssub.s32 1, %s6
  %s9 = scalar_select 0, %s8, %s6
  $region1: #{tpu_custom_call.1} parent=0
    #allocation2 [shape = 'u8[262144]{0}', space=vmem, size = 0x40000, scoped, tag = 'input window, operand 0']
    #allocation3 [shape = 's32[2]{0}', space=sflag, size = 0x8, scoped, tag = 'scoped memory for tpu_custom_call.1']
    #allocation4 [shape = 's32[2]{0}', space=sflag, size = 0x8, scoped, tag = 'scoped memory for tpu_custom_call.1']
    #allocation5 [shape = 'u8[65536]{0}', space=vmem, size = 0x10000, scoped, tag = 'input window, operand 1, single buffered']
    #allocation6 [shape = 's32[1]{0}', space=sflag, size = 0x4, scoped, tag = 'scoped memory for tpu_custom_call.1']
    #allocation7 [shape = 'u8[65536]{0}', space=vmem, size = 0x10000, scoped, tag = 'input window, operand 3, single buffered']
    #allocation8 [shape = 'u8[262144]{0}', space=vmem, size = 0x40000, scoped, tag = 'output window, operand 0']
    %10 = vsyncpa [#allocation3], 0
    %s11 = scalar_lea.sflag [#allocation3], 1
    %12 = vsyncpa %s11, 0
    %13 = vsyncpa [#allocation6], 0
    %14 = vsyncpa [#allocation4], 0
    %s15 = scalar_lea.sflag [#allocation4], 1
    %16 = vsyncpa %s15, 0
    loop: start=0, step=1, limit=10
    $region2: #{tpu_custom_call.1} parent=1 // loop_pre_header
      _
    $region3: #{tpu_custom_call.1} parent=1 // loop_header
      %s18 = sphi 0, %s22
      %p19 = scmp.ge.s32.totalorder %s18, 10
      %s28 = sphi 0, %s30
      %s31 = sphi 0, %s28
      %s32 = sphi 0, %s31
      %s48 = sphi 0, %s32
      %s52 = sphi 0, %s52
      %s54 = sphi 0, %s52
      %s55 = sphi 0, %s54
      %s69 = sphi 0, %s55
      %s73 = sphi 0, %s73
      %s75 = sphi 0, %s73
      %s76 = sphi 0, %s75
      %s90 = sphi 0, %s76
      %s94 = sphi 0, %s94
      %s96 = sphi 0, %s94
      %s97 = sphi 0, %s96
      %s111 = sphi 0, %s97
      %s115 = sphi 0, %s115
      %s117 = sphi 0, %s115
      %s118 = sphi 0, %s117
      %s132 = sphi 0, %s118
      %s138 = sphi 0, %s140
      %s141 = sphi 0, %s138
      %s142 = sphi 0, %s141
      %s158 = sphi 0, %s142
    $region4: #{tpu_custom_call.1} parent=1 // loop_header_branch
      %21 = sbr.rel (%p19) target = $region8
    $region5: #{tpu_custom_call.1} parent=1 // loop_body
      %s23 = ssub.s32 %s18, 1
      %s24 = ssub.s32 %s18, 2
      %s25 = sadd.s32 %s18, 1
      %s26 = ssub.s32 %s18, %s25
      %p27 = scmp.eq.s32.totalorder %s26, 0
      %s29 = sadd.s32 %s28, 1
      %s30 = scalar_select %p27, %s28, %s29
      %p33 = pneg %p27
      %p34 = scmp.eq.s32.totalorder %s18, 7
      %p35 = por %p33, %p34
      %p36 = scmp.ne.s32.totalorder %s28, %s31
      %p37 = scmp.eq.s32.totalorder %s18, 0
      %p38 = por %p36, %p37
      %p39 = scmp.ne.s32.totalorder %s28, %s31
      %p40 = scmp.eq.s32.totalorder %s23, 7
      %p41 = por %p39, %p40
      %p42 = scmp.ne.s32.totalorder %s31, %s32
      %p43 = scmp.eq.s32.totalorder %s23, 0
      %p44 = por %p42, %p43
      %p45 = scmp.ne.s32.totalorder %s31, %s32
      %p46 = scmp.eq.s32.totalorder %s24, 7
      %p47 = por %p45, %p46
      %p49 = scmp.ne.s32.totalorder %s32, %s48
      %p50 = scmp.eq.s32.totalorder %s24, 0
      %p51 = por %p49, %p50
      %s53 = sadd.s32 %s52, 1
      %p56 = scmp.eq.s32.totalorder %s18, 7
      %p57 = scmp.ne.s32.totalorder %s52, %s54
      %p58 = scmp.eq.s32.totalorder %s18, 0
      %p59 = por %p57, %p58
      %p60 = scmp.ne.s32.totalorder %s52, %s54
      %p61 = scmp.eq.s32.totalorder %s23, 7
      %p62 = por %p60, %p61
      %p63 = scmp.ne.s32.totalorder %s54, %s55
      %p64 = scmp.eq.s32.totalorder %s23, 0
      %p65 = por %p63, %p64
      %p66 = scmp.ne.s32.totalorder %s54, %s55
      %p67 = scmp.eq.s32.totalorder %s24, 7
      %p68 = por %p66, %p67
      %p70 = scmp.ne.s32.totalorder %s55, %s69
      %p71 = scmp.eq.s32.totalorder %s24, 0
      %p72 = por %p70, %p71
      %s74 = sadd.s32 %s73, 1
      %p77 = scmp.eq.s32.totalorder %s18, 7
      %p78 = scmp.ne.s32.totalorder %s73, %s75
      %p79 = scmp.eq.s32.totalorder %s18, 0
      %p80 = por %p78, %p79
      %p81 = scmp.ne.s32.totalorder %s73, %s75
      %p82 = scmp.eq.s32.totalorder %s23, 7
      %p83 = por %p81, %p82
      %p84 = scmp.ne.s32.totalorder %s75, %s76
      %p85 = scmp.eq.s32.totalorder %s23, 0
      %p86 = por %p84, %p85
      %p87 = scmp.ne.s32.totalorder %s75, %s76
      %p88 = scmp.eq.s32.totalorder %s24, 7
      %p89 = por %p87, %p88
      %p91 = scmp.ne.s32.totalorder %s76, %s90
      %p92 = scmp.eq.s32.totalorder %s24, 0
      %p93 = por %p91, %p92
      %s95 = sadd.s32 %s94, 1
      %p98 = scmp.eq.s32.totalorder %s18, 7
      %p99 = scmp.ne.s32.totalorder %s94, %s96
      %p100 = scmp.eq.s32.totalorder %s18, 0
      %p101 = por %p99, %p100
      %p102 = scmp.ne.s32.totalorder %s94, %s96
      %p103 = scmp.eq.s32.totalorder %s23, 7
      %p104 = por %p102, %p103
      %p105 = scmp.ne.s32.totalorder %s96, %s97
      %p106 = scmp.eq.s32.totalorder %s23, 0
      %p107 = por %p105, %p106
      %p108 = scmp.ne.s32.totalorder %s96, %s97
      %p109 = scmp.eq.s32.totalorder %s24, 7
      %p110 = por %p108, %p109
      %p112 = scmp.ne.s32.totalorder %s97, %s111
      %p113 = scmp.eq.s32.totalorder %s24, 0
      %p114 = por %p112, %p113
      %s116 = sadd.s32 %s115, 1
      %p119 = scmp.eq.s32.totalorder %s18, 7
      %p120 = scmp.ne.s32.totalorder %s115, %s117
      %p121 = scmp.eq.s32.totalorder %s18, 0
      %p122 = por %p120, %p121
      %p123 = scmp.ne.s32.totalorder %s115, %s117
      %p124 = scmp.eq.s32.totalorder %s23, 7
      %p125 = por %p123, %p124
      %p126 = scmp.ne.s32.totalorder %s117, %s118
      %p127 = scmp.eq.s32.totalorder %s23, 0
      %p128 = por %p126, %p127
      %p129 = scmp.ne.s32.totalorder %s117, %s118
      %p130 = scmp.eq.s32.totalorder %s24, 7
      %p131 = por %p129, %p130
      %p133 = scmp.ne.s32.totalorder %s118, %s132
      %p134 = scmp.eq.s32.totalorder %s24, 0
      %p135 = por %p133, %p134
      %s136 = ssub.s32 %s18, %s25
      %p137 = scmp.eq.s32.totalorder %s136, 0
      %s139 = sadd.s32 %s138, 1
      %s140 = scalar_select %p137, %s138, %s139
      %p143 = pneg %p137
      %p144 = scmp.eq.s32.totalorder %s18, 7
      %p145 = por %p143, %p144
      %p146 = scmp.ne.s32.totalorder %s138, %s141
      %p147 = scmp.eq.s32.totalorder %s18, 0
      %p148 = por %p146, %p147
      %p149 = scmp.ne.s32.totalorder %s138, %s141
      %p150 = scmp.eq.s32.totalorder %s23, 7
      %p151 = por %p149, %p150
      %p152 = scmp.ne.s32.totalorder %s141, %s142
      %p153 = scmp.eq.s32.totalorder %s23, 0
      %p154 = por %p152, %p153
      %p155 = scmp.ne.s32.totalorder %s141, %s142
      %p156 = scmp.eq.s32.totalorder %s24, 7
      %p157 = por %p155, %p156
      %p159 = scmp.ne.s32.totalorder %s142, %s158
      %p160 = scmp.eq.s32.totalorder %s24, 0
      %p161 = por %p159, %p160
      %p162 = scmp.le.s32.totalorder 1, %s18
      %p163 = scmp.lt.s32.totalorder %s18, 9
      %p164 = pnand %p162, %p163
      %p165 = pneg %p164
      // Predicated region
      $region9: #{tpu_custom_call.1} parent=5 // pred_check
        _
      $region10: #{tpu_custom_call.1} parent=5 // pred_check_branch
        %167 = sbr.rel (%p164) target = $region12
      $region11: #{tpu_custom_call.1} parent=5 // pred_region
        %s168 = ssub.s32 %s18, 1
        // Predicated region
        $region13: #{tpu_custom_call.1} parent=11 // pred_check
          %p169 = pneg %p65
        $region14: #{tpu_custom_call.1} parent=11 // pred_check_branch
          %171 = sbr.rel (%p169) target = $region16
        $region15: #{tpu_custom_call.1} parent=11 // pred_region
          %s173 = ssub.s32 2048, 2048
          %174 = vsyncadd [#allocation6], %s173
          %s175 = sshll.u32 [#allocation5], 4
          %s176 = int_to_ptr.vmem [resolvable:$true] %s175
          %181 = dma.hbm_to_vmem [thread:$0]  %s1, 2048, %s176, [#allocation6], 128, 128, 8
        $region16: #{tpu_custom_call.1} parent=11 // pred_fallthru
          _
        // Predicated region
        $region17: #{tpu_custom_call.1} parent=11 // pred_check
          %p182 = pneg %p86
        $region18: #{tpu_custom_call.1} parent=11 // pred_check_branch
          %184 = sbr.rel (%p182) target = $region20
        $region19: #{tpu_custom_call.1} parent=11 // pred_region
          _
        $region20: #{tpu_custom_call.1} parent=11 // pred_fallthru
          _
        // Predicated region
        $region21: #{tpu_custom_call.1} parent=11 // pred_check
          %p185 = pneg %p107
        $region22: #{tpu_custom_call.1} parent=11 // pred_check_branch
          %187 = sbr.rel (%p185) target = $region24
        $region23: #{tpu_custom_call.1} parent=11 // pred_region
          %s189 = ssub.s32 2048, 2048
          %190 = vsyncadd [#allocation6], %s189
          %s191 = sshll.u32 [#allocation7], 4
          %s192 = int_to_ptr.vmem [resolvable:$true] %s191
          %197 = dma.hbm_to_vmem [thread:$0]  %s3, 2048, %s192, [#allocation6], 128, 128, 8
        $region24: #{tpu_custom_call.1} parent=11 // pred_fallthru
          _
        // Predicated region
        $region25: #{tpu_custom_call.1} parent=11 // pred_check
          %p198 = pneg %p128
        $region26: #{tpu_custom_call.1} parent=11 // pred_check_branch
          %200 = sbr.rel (%p198) target = $region28
        $region27: #{tpu_custom_call.1} parent=11 // pred_region
          _
        $region28: #{tpu_custom_call.1} parent=11 // pred_fallthru
          _
      $region12: #{tpu_custom_call.1} parent=5 // pred_fallthru
        _
      %p201 = scmp.lt.s32.totalorder %s18, 8
      // Predicated region
      $region29: #{tpu_custom_call.1} parent=5 // pred_check
        %p202 = pneg %p201
      $region30: #{tpu_custom_call.1} parent=5 // pred_check_branch
        %204 = sbr.rel (%p202) target = $region32
      $region31: #{tpu_custom_call.1} parent=5 // pred_region
        // Predicated region
        $region33: #{tpu_custom_call.1} parent=31 // pred_check
          %p205 = pneg %p38
        $region34: #{tpu_custom_call.1} parent=31 // pred_check_branch
          %207 = sbr.rel (%p205) target = $region36
        $region35: #{tpu_custom_call.1} parent=31 // pred_region
          %s208 = sand.u32 %s28, 1
          %s209 = scalar_lea.sflag [#allocation3], %s208
          %s210 = sand.u32 %s28, 1
          %s211 = smul.addr %s210, 256
          %s212 = scalar_lea.vmem [#allocation2], %s211
          %s213 = smul.u32 32, %s18
          %s215 = ssub.s32 4096, 4096
          %216 = vsyncadd %s209, %s215
          %s217 = smul.addr %s213, 128
          %s218 = scalar_lea.hbm %s0, %s217
          %s219 = sshll.u32 %s212, 4
          %s220 = int_to_ptr.vmem [resolvable:$true] %s219
          %225 = dma.hbm_to_vmem [thread:$0]  %s218, 4096, %s220, %s209, 128, 128, 8
        $region36: #{tpu_custom_call.1} parent=31 // pred_fallthru
          _
      $region32: #{tpu_custom_call.1} parent=5 // pred_fallthru
        _
      %p226 = scmp.le.s32.totalorder 1, %s18
      %p227 = scmp.lt.s32.totalorder %s18, 9
      %p228 = pnand %p226, %p227
      %p229 = pneg %p228
      // Predicated region
      $region37: #{tpu_custom_call.1} parent=5 // pred_check
        _
      $region38: #{tpu_custom_call.1} parent=5 // pred_check_branch
        %231 = sbr.rel (%p228) target = $region40
      $region39: #{tpu_custom_call.1} parent=5 // pred_region
        %s232 = ssub.s32 %s18, 1
        %s233 = sand.u32 %s31, 1
        %s234 = scalar_lea.sflag [#allocation3], %s233
        %s235 = sand.u32 %s31, 1
        %s236 = smul.addr %s235, 256
        %s237 = scalar_lea.vmem [#allocation2], %s236
        // Predicated region
        $region41: #{tpu_custom_call.1} parent=39 // pred_check
          %p238 = pneg %p44
        $region42: #{tpu_custom_call.1} parent=39 // pred_check_branch
          %240 = sbr.rel (%p238) target = $region44
        $region43: #{tpu_custom_call.1} parent=39 // pred_region
          %241 = dma.done %s234, 4096
        $region44: #{tpu_custom_call.1} parent=39 // pred_fallthru
          _
        // Predicated region
        $region45: #{tpu_custom_call.1} parent=39 // pred_check
          %p242 = pneg %p65
        $region46: #{tpu_custom_call.1} parent=39 // pred_check_branch
          %244 = sbr.rel (%p242) target = $region48
        $region47: #{tpu_custom_call.1} parent=39 // pred_region
          %245 = dma.done [#allocation6], 2048
        $region48: #{tpu_custom_call.1} parent=39 // pred_fallthru
          _
        // Predicated region
        $region49: #{tpu_custom_call.1} parent=39 // pred_check
          %p246 = pneg %p107
        $region50: #{tpu_custom_call.1} parent=39 // pred_check_branch
          %248 = sbr.rel (%p246) target = $region52
        $region51: #{tpu_custom_call.1} parent=39 // pred_region
          %249 = dma.done [#allocation6], 2048
        $region52: #{tpu_custom_call.1} parent=39 // pred_fallthru
          _
        %s250 = sand.u32 %s31, 1
        %s251 = scalar_lea.sflag [#allocation3], %s250
        %s252 = sand.u32 %s31, 1
        %s253 = smul.addr %s252, 256
        %s254 = scalar_lea.vmem [#allocation2], %s253
        %p255 = pneg %p44
        %p256 = pneg %p41
        %p257 = pneg %p65
        %p258 = pneg %p62
        %p259 = pneg %p86
        %p260 = pneg %p83
        %p261 = pneg %p107
        %p262 = pneg %p104
        %p263 = pneg %p128
        %p264 = pneg %p125
        %p265 = pneg %p154
        %p266 = pneg %p151
        %s267 = sand.u32 %s141, 1
        %s268 = scalar_lea.sflag [#allocation4], %s267
        %s269 = sand.u32 %s141, 1
        %s270 = smul.addr %s269, 256
        %s271 = scalar_lea.vmem [#allocation8], %s270
        %s272 = smul.u32 32, %s23
        %s273 = smul.u32 32, %s23
        %v274 = vld [vmem:[%s237] sm:$0xff]
        %v275 = vld [vmem:[%s237 + $0x8] sm:$0xff]
        %v276 = vld [vmem:[%s237 + $0x10] sm:$0xff]
        %v277 = vld [vmem:[%s237 + $0x18] sm:$0xff]
        %v278 = vld [vmem:[%s237 + $0x20] sm:$0xff]
        %v279 = vld [vmem:[%s237 + $0x28] sm:$0xff]
        %v280 = vld [vmem:[%s237 + $0x30] sm:$0xff]
        %v281 = vld [vmem:[%s237 + $0x38] sm:$0xff]
        %v282 = vld [vmem:[%s237 + $0x40] sm:$0xff]
        %v283 = vld [vmem:[%s237 + $0x48] sm:$0xff]
        %v284 = vld [vmem:[%s237 + $0x50] sm:$0xff]
        %v285 = vld [vmem:[%s237 + $0x58] sm:$0xff]
        %v286 = vld [vmem:[%s237 + $0x60] sm:$0xff]
        %v287 = vld [vmem:[%s237 + $0x68] sm:$0xff]
        %v288 = vld [vmem:[%s237 + $0x70] sm:$0xff]
        %v289 = vld [vmem:[%s237 + $0x78] sm:$0xff]
        %v290 = vld [vmem:[%s237 + $0x80] sm:$0xff]
        %v291 = vld [vmem:[%s237 + $0x88] sm:$0xff]
        %v292 = vld [vmem:[%s237 + $0x90] sm:$0xff]
        %v293 = vld [vmem:[%s237 + $0x98] sm:$0xff]
        %v294 = vld [vmem:[%s237 + $0xa0] sm:$0xff]
        %v295 = vld [vmem:[%s237 + $0xa8] sm:$0xff]
        %v296 = vld [vmem:[%s237 + $0xb0] sm:$0xff]
        %v297 = vld [vmem:[%s237 + $0xb8] sm:$0xff]
        %v298 = vld [vmem:[%s237 + $0xc0] sm:$0xff]
        %v299 = vld [vmem:[%s237 + $0xc8] sm:$0xff]
        %v300 = vld [vmem:[%s237 + $0xd0] sm:$0xff]
        %v301 = vld [vmem:[%s237 + $0xd8] sm:$0xff]
        %v302 = vld [vmem:[%s237 + $0xe0] sm:$0xff]
        %v303 = vld [vmem:[%s237 + $0xe8] sm:$0xff]
        %v304 = vld [vmem:[%s237 + $0xf0] sm:$0xff]
        %v305 = vld [vmem:[%s237 + $0xf8] sm:$0xff]
        %v306 = vld [vmem:[#allocation5] sm:$0xff]
        %v307 = vld [vmem:[#allocation5 + $0x8] sm:$0xff]
        %v308 = vld [vmem:[#allocation5 + $0x10] sm:$0xff]
        %v309 = vld [vmem:[#allocation5 + $0x18] sm:$0xff]
        %v310 = vld [vmem:[#allocation5 + $0x20] sm:$0xff]
        %v311 = vld [vmem:[#allocation5 + $0x28] sm:$0xff]
        %v312 = vld [vmem:[#allocation5 + $0x30] sm:$0xff]
        %v313 = vld [vmem:[#allocation5 + $0x38] sm:$0xff]
        %v314 = vld [vmem:[#allocation5 + $0x40] sm:$0xff]
        %v315 = vld [vmem:[#allocation5 + $0x48] sm:$0xff]
        %v316 = vld [vmem:[#allocation5 + $0x50] sm:$0xff]
        %v317 = vld [vmem:[#allocation5 + $0x58] sm:$0xff]
        %v318 = vld [vmem:[#allocation5 + $0x60] sm:$0xff]
        %v319 = vld [vmem:[#allocation5 + $0x68] sm:$0xff]
        %v320 = vld [vmem:[#allocation5 + $0x70] sm:$0xff]
        %v321 = vld [vmem:[#allocation5 + $0x78] sm:$0xff]
        %v322 = vld [vmem:[%s2] sm:$0x1]
        %v324 = vlaneseq
        %v325 = vshrl.u32 %v324, 7
        %v326 = vsub.s32 0, %v325
        %v327 = vrot.slane %v322, %v326
        %329 = vmatprep.subr.mxu0 0.0
        %330 = vmatpush1.msra.mxu0 %v306
        %331 = vmatprep.subr.mxu0 0.0
        %332 = vmatpush1.msra.mxu0 %v307
        %333 = vmatprep.subr.mxu0 0.0
        %334 = vmatpush1.msra.mxu0 %v308
        %335 = vmatprep.subr.mxu0 0.0
        %336 = vmatpush1.msra.mxu0 %v309
        %337 = vmatprep.subr.mxu0 0.0
        %338 = vmatpush1.msra.mxu0 %v310
        %339 = vmatprep.subr.mxu0 0.0
        %340 = vmatpush1.msra.mxu0 %v311
        %341 = vmatprep.subr.mxu0 0.0
        %342 = vmatpush1.msra.mxu0 %v312
        %343 = vmatprep.subr.mxu0 0.0
        %344 = vmatpush1.msra.mxu0 %v313
        %345 = vmatprep.subr.mxu0 0.0
        %346 = vmatpush1.msra.mxu0 %v314
        %347 = vmatprep.subr.mxu0 0.0
        %348 = vmatpush1.msra.mxu0 %v315
        %349 = vmatprep.subr.mxu0 0.0
        %350 = vmatpush1.msra.mxu0 %v316
        %351 = vmatprep.subr.mxu0 0.0
        %352 = vmatpush1.msra.mxu0 %v317
        %353 = vmatprep.subr.mxu0 0.0
        %354 = vmatpush1.msra.mxu0 %v318
        %355 = vmatprep.subr.mxu0 0.0
        %356 = vmatpush1.msra.mxu0 %v319
        %357 = vmatprep.subr.mxu0 0.0
        %358 = vmatpush1.msra.mxu0 %v320
        %359 = vmatprep.subr.mxu0 0.0
        %360 = vmatpush1.msra.mxu0 %v321
        %361 = vmatprep.subr.mxu0 0.0
        %362 = vmatpush1.msra.mxu0 0.0
        %363 = vmatprep.subr.mxu0 0.0
        %364 = vmatpush1.msra.mxu0 0.0
        %365 = vmatprep.subr.mxu0 0.0
        %366 = vmatpush1.msra.mxu0 0.0
        %367 = vmatprep.subr.mxu0 0.0
        %368 = vmatpush1.msra.mxu0 0.0
        %369 = vmatprep.subr.mxu0 0.0
        %370 = vmatpush1.msra.mxu0 0.0
        %371 = vmatprep.subr.mxu0 0.0
        %372 = vmatpush1.msra.mxu0 0.0
        %373 = vmatprep.subr.mxu0 0.0
        %374 = vmatpush1.msra.mxu0 0.0
        %375 = vmatprep.subr.mxu0 0.0
        %376 = vmatpush1.msra.mxu0 0.0
        %377 = vmatprep.subr.mxu0 0.0
        %378 = vmatpush1.msra.mxu0 0.0
        %379 = vmatprep.subr.mxu0 0.0
        %380 = vmatpush1.msra.mxu0 0.0
        %381 = vmatprep.subr.mxu0 0.0
        %382 = vmatpush1.msra.mxu0 0.0
        %383 = vmatprep.subr.mxu0 0.0
        %384 = vmatpush1.msra.mxu0 0.0
        %385 = vmatprep.subr.mxu0 0.0
        %386 = vmatpush1.msra.mxu0 0.0
        %387 = vmatprep.subr.mxu0 0.0
        %388 = vmatpush1.msra.mxu0 0.0
        %389 = vmatprep.subr.mxu0 0.0
        %390 = vmatpush1.msra.mxu0 0.0
        %391 = vmatprep.subr.mxu0 0.0
        %392 = vmatpush1.msra.mxu0 0.0
        %393 = vmatprep.mubr.f32.mxu0 0.0
        %394 = vmatmul.mubr.f32.gmra.mrb[0].mxu0 %v274
        %v395 = vpop.f32.mrb[0].mxu0
        %v396 = vadd.f32 %v327, %v395
        %v397 = vpop.f32.mrb[0].mxu0
        %398 = vmatprep.mubr.f32.mxu0 0.0
        %399 = vmatmul.mubr.f32.gmra.mrb[0].mxu0 %v275
        %v400 = vpop.f32.mrb[0].mxu0
        %v401 = vadd.f32 %v327, %v400
        %v402 = vpop.f32.mrb[0].mxu0
        %403 = vmatprep.mubr.f32.mxu0 0.0
        %404 = vmatmul.mubr.f32.gmra.mrb[0].mxu0 %v276
        %v405 = vpop.f32.mrb[0].mxu0
        %v406 = vadd.f32 %v327, %v405
        %v407 = vpop.f32.mrb[0].mxu0
        %408 = vmatprep.mubr.f32.mxu0 0.0
        %409 = vmatmul.mubr.f32.gmra.mrb[0].mxu0 %v277
        %v410 = vpop.f32.mrb[0].mxu0
        %v411 = vadd.f32 %v327, %v410
        %v412 = vpop.f32.mrb[0].mxu0
        %413 = vmatprep.mubr.f32.mxu0 0.0
        %414 = vmatmul.mubr.f32.gmra.mrb[0].mxu0 %v278
        %v415 = vpop.f32.mrb[0].mxu0
        %v416 = vadd.f32 %v327, %v415
        %v417 = vpop.f32.mrb[0].mxu0
        %418 = vmatprep.mubr.f32.mxu0 0.0
        %419 = vmatmul.mubr.f32.gmra.mrb[0].mxu0 %v279
        %v420 = vpop.f32.mrb[0].mxu0
        %v421 = vadd.f32 %v327, %v420
        %v422 = vpop.f32.mrb[0].mxu0
        %423 = vmatprep.mubr.f32.mxu0 0.0
        %424 = vmatmul.mubr.f32.gmra.mrb[0].mxu0 %v280
        %v425 = vpop.f32.mrb[0].mxu0
        %v426 = vadd.f32 %v327, %v425
        %v427 = vpop.f32.mrb[0].mxu0
        %428 = vmatprep.mubr.f32.mxu0 0.0
        %429 = vmatmul.mubr.f32.gmra.mrb[0].mxu0 %v281
        %v430 = vpop.f32.mrb[0].mxu0
        %v431 = vadd.f32 %v327, %v430
        %v432 = vpop.f32.mrb[0].mxu0
        %433 = vmatprep.mubr.f32.mxu0 0.0
        %434 = vmatmul.mubr.f32.gmra.mrb[0].mxu0 %v282
        %v435 = vpop.f32.mrb[0].mxu0
        %v436 = vadd.f32 %v327, %v435
        %v437 = vpop.f32.mrb[0].mxu0
        %438 = vmatprep.mubr.f32.mxu0 0.0
        %439 = vmatmul.mubr.f32.gmra.mrb[0].mxu0 %v283
        %v440 = vpop.f32.mrb[0].mxu0
        %v441 = vadd.f32 %v327, %v440
        %v442 = vpop.f32.mrb[0].mxu0
        %443 = vmatprep.mubr.f32.mxu0 0.0
        %444 = vmatmul.mubr.f32.gmra.mrb[0].mxu0 %v284
        %v445 = vpop.f32.mrb[0].mxu0
        %v446 = vadd.f32 %v327, %v445
        %v447 = vpop.f32.mrb[0].mxu0
        %448 = vmatprep.mubr.f32.mxu0 0.0
        %449 = vmatmul.mubr.f32.gmra.mrb[0].mxu0 %v285
        %v450 = vpop.f32.mrb[0].mxu0
        %v451 = vadd.f32 %v327, %v450
        %v452 = vpop.f32.mrb[0].mxu0
        %453 = vmatprep.mubr.f32.mxu0 0.0
        %454 = vmatmul.mubr.f32.gmra.mrb[0].mxu0 %v286
        %v455 = vpop.f32.mrb[0].mxu0
        %v456 = vadd.f32 %v327, %v455
        %v457 = vpop.f32.mrb[0].mxu0
        %458 = vmatprep.mubr.f32.mxu0 0.0
        %459 = vmatmul.mubr.f32.gmra.mrb[0].mxu0 %v287
        %v460 = vpop.f32.mrb[0].mxu0
        %v461 = vadd.f32 %v327, %v460
        %v462 = vpop.f32.mrb[0].mxu0
        %463 = vmatprep.mubr.f32.mxu0 0.0
        %464 = vmatmul.mubr.f32.gmra.mrb[0].mxu0 %v288
        %v465 = vpop.f32.mrb[0].mxu0
        %v466 = vadd.f32 %v327, %v465
        %v467 = vpop.f32.mrb[0].mxu0
        %468 = vmatprep.mubr.f32.mxu0 0.0
        %469 = vmatmul.mubr.f32.gmra.mrb[0].mxu0 %v289
        %v470 = vpop.f32.mrb[0].mxu0
        %v471 = vadd.f32 %v327, %v470
        %v472 = vpop.f32.mrb[0].mxu0
        %473 = vmatprep.mubr.f32.mxu0 0.0
        %474 = vmatmul.mubr.f32.gmra.mrb[0].mxu0 %v290
        %v475 = vpop.f32.mrb[0].mxu0
        %v476 = vadd.f32 %v327, %v475
        %v477 = vpop.f32.mrb[0].mxu0
        %478 = vmatprep.mubr.f32.mxu0 0.0
        %479 = vmatmul.mubr.f32.gmra.mrb[0].mxu0 %v291
        %v480 = vpop.f32.mrb[0].mxu0
        %v481 = vadd.f32 %v327, %v480
        %v482 = vpop.f32.mrb[0].mxu0
        %483 = vmatprep.mubr.f32.mxu0 0.0
        %484 = vmatmul.mubr.f32.gmra.mrb[0].mxu0 %v292
        %v485 = vpop.f32.mrb[0].mxu0
        %v486 = vadd.f32 %v327, %v485
        %v487 = vpop.f32.mrb[0].mxu0
        %488 = vmatprep.mubr.f32.mxu0 0.0
        %489 = vmatmul.mubr.f32.gmra.mrb[0].mxu0 %v293
        %v490 = vpop.f32.mrb[0].mxu0
        %v491 = vadd.f32 %v327, %v490
        %v492 = vpop.f32.mrb[0].mxu0
        %493 = vmatprep.mubr.f32.mxu0 0.0
        %494 = vmatmul.mubr.f32.gmra.mrb[0].mxu0 %v294
        %v495 = vpop.f32.mrb[0].mxu0
        %v496 = vadd.f32 %v327, %v495
        %v497 = vpop.f32.mrb[0].mxu0
        %498 = vmatprep.mubr.f32.mxu0 0.0
        %499 = vmatmul.mubr.f32.gmra.mrb[0].mxu0 %v295
        %v500 = vpop.f32.mrb[0].mxu0
        %v501 = vadd.f32 %v327, %v500
        %v502 = vpop.f32.mrb[0].mxu0
        %503 = vmatprep.mubr.f32.mxu0 0.0
        %504 = vmatmul.mubr.f32.gmra.mrb[0].mxu0 %v296
        %v505 = vpop.f32.mrb[0].mxu0
        %v506 = vadd.f32 %v327, %v505
        %v507 = vpop.f32.mrb[0].mxu0
        %508 = vmatprep.mubr.f32.mxu0 0.0
        %509 = vmatmul.mubr.f32.gmra.mrb[0].mxu0 %v297
        %v510 = vpop.f32.mrb[0].mxu0
        %v511 = vadd.f32 %v327, %v510
        %v512 = vpop.f32.mrb[0].mxu0
        %513 = vmatprep.mubr.f32.mxu0 0.0
        %514 = vmatmul.mubr.f32.gmra.mrb[0].mxu0 %v298
        %v515 = vpop.f32.mrb[0].mxu0
        %v516 = vadd.f32 %v327, %v515
        %v517 = vpop.f32.mrb[0].mxu0
        %518 = vmatprep.mubr.f32.mxu0 0.0
        %519 = vmatmul.mubr.f32.gmra.mrb[0].mxu0 %v299
        %v520 = vpop.f32.mrb[0].mxu0
        %v521 = vadd.f32 %v327, %v520
        %v522 = vpop.f32.mrb[0].mxu0
        %523 = vmatprep.mubr.f32.mxu0 0.0
        %524 = vmatmul.mubr.f32.gmra.mrb[0].mxu0 %v300
        %v525 = vpop.f32.mrb[0].mxu0
        %v526 = vadd.f32 %v327, %v525
        %v527 = vpop.f32.mrb[0].mxu0
        %528 = vmatprep.mubr.f32.mxu0 0.0
        %529 = vmatmul.mubr.f32.gmra.mrb[0].mxu0 %v301
        %v530 = vpop.f32.mrb[0].mxu0
        %v531 = vadd.f32 %v327, %v530
        %v532 = vpop.f32.mrb[0].mxu0
        %533 = vmatprep.mubr.f32.mxu0 0.0
        %534 = vmatmul.mubr.f32.gmra.mrb[0].mxu0 %v302
        %v535 = vpop.f32.mrb[0].mxu0
        %v536 = vadd.f32 %v327, %v535
        %v537 = vpop.f32.mrb[0].mxu0
        %538 = vmatprep.mubr.f32.mxu0 0.0
        %539 = vmatmul.mubr.f32.gmra.mrb[0].mxu0 %v303
        %v540 = vpop.f32.mrb[0].mxu0
        %v541 = vadd.f32 %v327, %v540
        %v542 = vpop.f32.mrb[0].mxu0
        %543 = vmatprep.mubr.f32.mxu0 0.0
        %544 = vmatmul.mubr.f32.gmra.mrb[0].mxu0 %v304
        %v545 = vpop.f32.mrb[0].mxu0
        %v546 = vadd.f32 %v327, %v545
        %v547 = vpop.f32.mrb[0].mxu0
        %548 = vmatprep.mubr.f32.mxu0 0.0
        %549 = vmatmul.mubr.f32.gmra.mrb[0].mxu0 %v305
        %v550 = vpop.f32.mrb[0].mxu0
        %v551 = vadd.f32 %v327, %v550
        %v552 = vpop.f32.mrb[0].mxu0
        %553 = vdwg.mxu0
        %v554 = vmul.f32 %v396, -900.0
        %v555 = vmul.f32 %v401, -900.0
        %v556 = vmul.f32 %v406, -900.0
        %v557 = vmul.f32 %v411, -900.0
        %v558 = vmul.f32 %v416, -900.0
        %v559 = vmul.f32 %v421, -900.0
        %v560 = vmul.f32 %v426, -900.0
        %v561 = vmul.f32 %v431, -900.0
        %v562 = vmul.f32 %v436, -900.0
        %v563 = vmul.f32 %v441, -900.0
        %v564 = vmul.f32 %v446, -900.0
        %v565 = vmul.f32 %v451, -900.0
        %v566 = vmul.f32 %v456, -900.0
        %v567 = vmul.f32 %v461, -900.0
        %v568 = vmul.f32 %v466, -900.0
        %v569 = vmul.f32 %v471, -900.0
        %v570 = vmul.f32 %v476, -900.0
        %v571 = vmul.f32 %v481, -900.0
        %v572 = vmul.f32 %v486, -900.0
        %v573 = vmul.f32 %v491, -900.0
        %v574 = vmul.f32 %v496, -900.0
        %v575 = vmul.f32 %v501, -900.0
        %v576 = vmul.f32 %v506, -900.0
        %v577 = vmul.f32 %v511, -900.0
        %v578 = vmul.f32 %v516, -900.0
        %v579 = vmul.f32 %v521, -900.0
        %v580 = vmul.f32 %v526, -900.0
        %v581 = vmul.f32 %v531, -900.0
        %v582 = vmul.f32 %v536, -900.0
        %v583 = vmul.f32 %v541, -900.0
        %v584 = vmul.f32 %v546, -900.0
        %v585 = vmul.f32 %v551, -900.0
        %v586 = vmul.f32 %v554, %v396
        %v587 = vmul.f32 %v555, %v401
        %v588 = vmul.f32 %v556, %v406
        %v589 = vmul.f32 %v557, %v411
        %v590 = vmul.f32 %v558, %v416
        %v591 = vmul.f32 %v559, %v421
        %v592 = vmul.f32 %v560, %v426
        %v593 = vmul.f32 %v561, %v431
        %v594 = vmul.f32 %v562, %v436
        %v595 = vmul.f32 %v563, %v441
        %v596 = vmul.f32 %v564, %v446
        %v597 = vmul.f32 %v565, %v451
        %v598 = vmul.f32 %v566, %v456
        %v599 = vmul.f32 %v567, %v461
        %v600 = vmul.f32 %v568, %v466
        %v601 = vmul.f32 %v569, %v471
        %v602 = vmul.f32 %v570, %v476
        %v603 = vmul.f32 %v571, %v481
        %v604 = vmul.f32 %v572, %v486
        %v605 = vmul.f32 %v573, %v491
        %v606 = vmul.f32 %v574, %v496
        %v607 = vmul.f32 %v575, %v501
        %v608 = vmul.f32 %v576, %v506
        %v609 = vmul.f32 %v577, %v511
        %v610 = vmul.f32 %v578, %v516
        %v611 = vmul.f32 %v579, %v521
        %v612 = vmul.f32 %v580, %v526
        %v613 = vmul.f32 %v581, %v531
        %v614 = vmul.f32 %v582, %v536
        %v615 = vmul.f32 %v583, %v541
        %v616 = vmul.f32 %v584, %v546
        %v617 = vmul.f32 %v585, %v551
        %v618 = vmul.f32 %v586, 1.442695
        %v619 = vpow.pop %v618
        %v620 = vmul.f32 %v587, 1.442695
        %v621 = vpow.pop %v620
        %v622 = vmul.f32 %v588, 1.442695
        %v623 = vpow.pop %v622
        %v624 = vmul.f32 %v589, 1.442695
        %v625 = vpow.pop %v624
        %v626 = vmul.f32 %v590, 1.442695
        %v627 = vpow.pop %v626
        %v628 = vmul.f32 %v591, 1.442695
        %v629 = vpow.pop %v628
        %v630 = vmul.f32 %v592, 1.442695
        %v631 = vpow.pop %v630
        %v632 = vmul.f32 %v593, 1.442695
        %v633 = vpow.pop %v632
        %v634 = vmul.f32 %v594, 1.442695
        %v635 = vpow.pop %v634
        %v636 = vmul.f32 %v595, 1.442695
        %v637 = vpow.pop %v636
        %v638 = vmul.f32 %v596, 1.442695
        %v639 = vpow.pop %v638
        %v640 = vmul.f32 %v597, 1.442695
        %v641 = vpow.pop %v640
        %v642 = vmul.f32 %v598, 1.442695
        %v643 = vpow.pop %v642
        %v644 = vmul.f32 %v599, 1.442695
        %v645 = vpow.pop %v644
        %v646 = vmul.f32 %v600, 1.442695
        %v647 = vpow.pop %v646
        %v648 = vmul.f32 %v601, 1.442695
        %v649 = vpow.pop %v648
        %v650 = vmul.f32 %v602, 1.442695
        %v651 = vpow.pop %v650
        %v652 = vmul.f32 %v603, 1.442695
        %v653 = vpow.pop %v652
        %v654 = vmul.f32 %v604, 1.442695
        %v655 = vpow.pop %v654
        %v656 = vmul.f32 %v605, 1.442695
        %v657 = vpow.pop %v656
        %v658 = vmul.f32 %v606, 1.442695
        %v659 = vpow.pop %v658
        %v660 = vmul.f32 %v607, 1.442695
        %v661 = vpow.pop %v660
        %v662 = vmul.f32 %v608, 1.442695
        %v663 = vpow.pop %v662
        %v664 = vmul.f32 %v609, 1.442695
        %v665 = vpow.pop %v664
        %v666 = vmul.f32 %v610, 1.442695
        %v667 = vpow.pop %v666
        %v668 = vmul.f32 %v611, 1.442695
        %v669 = vpow.pop %v668
        %v670 = vmul.f32 %v612, 1.442695
        %v671 = vpow.pop %v670
        %v672 = vmul.f32 %v613, 1.442695
        %v673 = vpow.pop %v672
        %v674 = vmul.f32 %v614, 1.442695
        %v675 = vpow.pop %v674
        %v676 = vmul.f32 %v615, 1.442695
        %v677 = vpow.pop %v676
        %v678 = vmul.f32 %v616, 1.442695
        %v679 = vpow.pop %v678
        %v680 = vmul.f32 %v617, 1.442695
        %v681 = vpow.pop %v680
        %v682 = vld [vmem:[#allocation7] sm:$0xff]
        %v683 = vld [vmem:[#allocation7 + $0x8] sm:$0xff]
        %v684 = vld [vmem:[#allocation7 + $0x10] sm:$0xff]
        %v685 = vld [vmem:[#allocation7 + $0x18] sm:$0xff]
        %v686 = vld [vmem:[#allocation7 + $0x20] sm:$0xff]
        %v687 = vld [vmem:[#allocation7 + $0x28] sm:$0xff]
        %v688 = vld [vmem:[#allocation7 + $0x30] sm:$0xff]
        %v689 = vld [vmem:[#allocation7 + $0x38] sm:$0xff]
        %v690 = vld [vmem:[#allocation7 + $0x40] sm:$0xff]
        %v691 = vld [vmem:[#allocation7 + $0x48] sm:$0xff]
        %v692 = vld [vmem:[#allocation7 + $0x50] sm:$0xff]
        %v693 = vld [vmem:[#allocation7 + $0x58] sm:$0xff]
        %v694 = vld [vmem:[#allocation7 + $0x60] sm:$0xff]
        %v695 = vld [vmem:[#allocation7 + $0x68] sm:$0xff]
        %v696 = vld [vmem:[#allocation7 + $0x70] sm:$0xff]
        %v697 = vld [vmem:[#allocation7 + $0x78] sm:$0xff]
        %v698 = vld [vmem:[%s4] sm:$0x1]
        %v700 = vlaneseq
        %v701 = vshrl.u32 %v700, 7
        %v702 = vsub.s32 0, %v701
        %v703 = vrot.slane %v698, %v702
        %705 = vmatprep.subr.mxu0 0.0
        %706 = vmatpush1.msra.mxu0 %v682
        %707 = vmatprep.subr.mxu0 0.0
        %708 = vmatpush1.msra.mxu0 %v683
        %709 = vmatprep.subr.mxu0 0.0
        %710 = vmatpush1.msra.mxu0 %v684
        %711 = vmatprep.subr.mxu0 0.0
        %712 = vmatpush1.msra.mxu0 %v685
        %713 = vmatprep.subr.mxu0 0.0
        %714 = vmatpush1.msra.mxu0 %v686
        %715 = vmatprep.subr.mxu0 0.0
        %716 = vmatpush1.msra.mxu0 %v687
        %717 = vmatprep.subr.mxu0 0.0
        %718 = vmatpush1.msra.mxu0 %v688
        %719 = vmatprep.subr.mxu0 0.0
        %720 = vmatpush1.msra.mxu0 %v689
        %721 = vmatprep.subr.mxu0 0.0
        %722 = vmatpush1.msra.mxu0 %v690
        %723 = vmatprep.subr.mxu0 0.0
        %724 = vmatpush1.msra.mxu0 %v691
        %725 = vmatprep.subr.mxu0 0.0
        %726 = vmatpush1.msra.mxu0 %v692
        %727 = vmatprep.subr.mxu0 0.0
        %728 = vmatpush1.msra.mxu0 %v693
        %729 = vmatprep.subr.mxu0 0.0
        %730 = vmatpush1.msra.mxu0 %v694
        %731 = vmatprep.subr.mxu0 0.0
        %732 = vmatpush1.msra.mxu0 %v695
        %733 = vmatprep.subr.mxu0 0.0
        %734 = vmatpush1.msra.mxu0 %v696
        %735 = vmatprep.subr.mxu0 0.0
        %736 = vmatpush1.msra.mxu0 %v697
        %737 = vmatprep.subr.mxu0 0.0
        %738 = vmatpush1.msra.mxu0 0.0
        %739 = vmatprep.subr.mxu0 0.0
        %740 = vmatpush1.msra.mxu0 0.0
        %741 = vmatprep.subr.mxu0 0.0
        %742 = vmatpush1.msra.mxu0 0.0
        %743 = vmatprep.subr.mxu0 0.0
        %744 = vmatpush1.msra.mxu0 0.0
        %745 = vmatprep.subr.mxu0 0.0
        %746 = vmatpush1.msra.mxu0 0.0
        %747 = vmatprep.subr.mxu0 0.0
        %748 = vmatpush1.msra.mxu0 0.0
        %749 = vmatprep.subr.mxu0 0.0
        %750 = vmatpush1.msra.mxu0 0.0
        %751 = vmatprep.subr.mxu0 0.0
        %752 = vmatpush1.msra.mxu0 0.0
        %753 = vmatprep.subr.mxu0 0.0
        %754 = vmatpush1.msra.mxu0 0.0
        %755 = vmatprep.subr.mxu0 0.0
        %756 = vmatpush1.msra.mxu0 0.0
        %757 = vmatprep.subr.mxu0 0.0
        %758 = vmatpush1.msra.mxu0 0.0
        %759 = vmatprep.subr.mxu0 0.0
        %760 = vmatpush1.msra.mxu0 0.0
        %761 = vmatprep.subr.mxu0 0.0
        %762 = vmatpush1.msra.mxu0 0.0
        %763 = vmatprep.subr.mxu0 0.0
        %764 = vmatpush1.msra.mxu0 0.0
        %765 = vmatprep.subr.mxu0 0.0
        %766 = vmatpush1.msra.mxu0 0.0
        %767 = vmatprep.subr.mxu0 0.0
        %768 = vmatpush1.msra.mxu0 0.0
        %769 = vmatprep.mubr.f32.mxu0 0.0
        %770 = vmatmul.mubr.f32.gmra.mrb[0].mxu0 %v619
        %v771 = vpop.f32.mrb[0].mxu0
        %v772 = vadd.f32 %v703, %v771
        %v773 = vpop.f32.mrb[0].mxu0
        %774 = vmatprep.mubr.f32.mxu0 0.0
        %775 = vmatmul.mubr.f32.gmra.mrb[0].mxu0 %v621
        %v776 = vpop.f32.mrb[0].mxu0
        %v777 = vadd.f32 %v703, %v776
        %v778 = vpop.f32.mrb[0].mxu0
        %779 = vmatprep.mubr.f32.mxu0 0.0
        %780 = vmatmul.mubr.f32.gmra.mrb[0].mxu0 %v623
        %v781 = vpop.f32.mrb[0].mxu0
        %v782 = vadd.f32 %v703, %v781
        %v783 = vpop.f32.mrb[0].mxu0
        %784 = vmatprep.mubr.f32.mxu0 0.0
        %785 = vmatmul.mubr.f32.gmra.mrb[0].mxu0 %v625
        %v786 = vpop.f32.mrb[0].mxu0
        %v787 = vadd.f32 %v703, %v786
        %v788 = vpop.f32.mrb[0].mxu0
        %789 = vmatprep.mubr.f32.mxu0 0.0
        %790 = vmatmul.mubr.f32.gmra.mrb[0].mxu0 %v627
        %v791 = vpop.f32.mrb[0].mxu0
        %v792 = vadd.f32 %v703, %v791
        %v793 = vpop.f32.mrb[0].mxu0
        %794 = vmatprep.mubr.f32.mxu0 0.0
        %795 = vmatmul.mubr.f32.gmra.mrb[0].mxu0 %v629
        %v796 = vpop.f32.mrb[0].mxu0
        %v797 = vadd.f32 %v703, %v796
        %v798 = vpop.f32.mrb[0].mxu0
        %799 = vmatprep.mubr.f32.mxu0 0.0
        %800 = vmatmul.mubr.f32.gmra.mrb[0].mxu0 %v631
        %v801 = vpop.f32.mrb[0].mxu0
        %v802 = vadd.f32 %v703, %v801
        %v803 = vpop.f32.mrb[0].mxu0
        %804 = vmatprep.mubr.f32.mxu0 0.0
        %805 = vmatmul.mubr.f32.gmra.mrb[0].mxu0 %v633
        %v806 = vpop.f32.mrb[0].mxu0
        %v807 = vadd.f32 %v703, %v806
        %v808 = vpop.f32.mrb[0].mxu0
        %809 = vmatprep.mubr.f32.mxu0 0.0
        %810 = vmatmul.mubr.f32.gmra.mrb[0].mxu0 %v635
        %v811 = vpop.f32.mrb[0].mxu0
        %v812 = vadd.f32 %v703, %v811
        %v813 = vpop.f32.mrb[0].mxu0
        %814 = vmatprep.mubr.f32.mxu0 0.0
        %815 = vmatmul.mubr.f32.gmra.mrb[0].mxu0 %v637
        %v816 = vpop.f32.mrb[0].mxu0
        %v817 = vadd.f32 %v703, %v816
        %v818 = vpop.f32.mrb[0].mxu0
        %819 = vmatprep.mubr.f32.mxu0 0.0
        %820 = vmatmul.mubr.f32.gmra.mrb[0].mxu0 %v639
        %v821 = vpop.f32.mrb[0].mxu0
        %v822 = vadd.f32 %v703, %v821
        %v823 = vpop.f32.mrb[0].mxu0
        %824 = vmatprep.mubr.f32.mxu0 0.0
        %825 = vmatmul.mubr.f32.gmra.mrb[0].mxu0 %v641
        %v826 = vpop.f32.mrb[0].mxu0
        %v827 = vadd.f32 %v703, %v826
        %v828 = vpop.f32.mrb[0].mxu0
        %829 = vmatprep.mubr.f32.mxu0 0.0
        %830 = vmatmul.mubr.f32.gmra.mrb[0].mxu0 %v643
        %v831 = vpop.f32.mrb[0].mxu0
        %v832 = vadd.f32 %v703, %v831
        %v833 = vpop.f32.mrb[0].mxu0
        %834 = vmatprep.mubr.f32.mxu0 0.0
        %835 = vmatmul.mubr.f32.gmra.mrb[0].mxu0 %v645
        %v836 = vpop.f32.mrb[0].mxu0
        %v837 = vadd.f32 %v703, %v836
        %v838 = vpop.f32.mrb[0].mxu0
        %839 = vmatprep.mubr.f32.mxu0 0.0
        %840 = vmatmul.mubr.f32.gmra.mrb[0].mxu0 %v647
        %v841 = vpop.f32.mrb[0].mxu0
        %v842 = vadd.f32 %v703, %v841
        %v843 = vpop.f32.mrb[0].mxu0
        %844 = vmatprep.mubr.f32.mxu0 0.0
        %845 = vmatmul.mubr.f32.gmra.mrb[0].mxu0 %v649
        %v846 = vpop.f32.mrb[0].mxu0
        %v847 = vadd.f32 %v703, %v846
        %v848 = vpop.f32.mrb[0].mxu0
        %849 = vmatprep.mubr.f32.mxu0 0.0
        %850 = vmatmul.mubr.f32.gmra.mrb[0].mxu0 %v651
        %v851 = vpop.f32.mrb[0].mxu0
        %v852 = vadd.f32 %v703, %v851
        %v853 = vpop.f32.mrb[0].mxu0
        %854 = vmatprep.mubr.f32.mxu0 0.0
        %855 = vmatmul.mubr.f32.gmra.mrb[0].mxu0 %v653
        %v856 = vpop.f32.mrb[0].mxu0
        %v857 = vadd.f32 %v703, %v856
        %v858 = vpop.f32.mrb[0].mxu0
        %859 = vmatprep.mubr.f32.mxu0 0.0
        %860 = vmatmul.mubr.f32.gmra.mrb[0].mxu0 %v655
        %v861 = vpop.f32.mrb[0].mxu0
        %v862 = vadd.f32 %v703, %v861
        %v863 = vpop.f32.mrb[0].mxu0
        %864 = vmatprep.mubr.f32.mxu0 0.0
        %865 = vmatmul.mubr.f32.gmra.mrb[0].mxu0 %v657
        %v866 = vpop.f32.mrb[0].mxu0
        %v867 = vadd.f32 %v703, %v866
        %v868 = vpop.f32.mrb[0].mxu0
        %869 = vmatprep.mubr.f32.mxu0 0.0
        %870 = vmatmul.mubr.f32.gmra.mrb[0].mxu0 %v659
        %v871 = vpop.f32.mrb[0].mxu0
        %v872 = vadd.f32 %v703, %v871
        %v873 = vpop.f32.mrb[0].mxu0
        %874 = vmatprep.mubr.f32.mxu0 0.0
        %875 = vmatmul.mubr.f32.gmra.mrb[0].mxu0 %v661
        %v876 = vpop.f32.mrb[0].mxu0
        %v877 = vadd.f32 %v703, %v876
        %v878 = vpop.f32.mrb[0].mxu0
        %879 = vmatprep.mubr.f32.mxu0 0.0
        %880 = vmatmul.mubr.f32.gmra.mrb[0].mxu0 %v663
        %v881 = vpop.f32.mrb[0].mxu0
        %v882 = vadd.f32 %v703, %v881
        %v883 = vpop.f32.mrb[0].mxu0
        %884 = vmatprep.mubr.f32.mxu0 0.0
        %885 = vmatmul.mubr.f32.gmra.mrb[0].mxu0 %v665
        %v886 = vpop.f32.mrb[0].mxu0
        %v887 = vadd.f32 %v703, %v886
        %v888 = vpop.f32.mrb[0].mxu0
        %889 = vmatprep.mubr.f32.mxu0 0.0
        %890 = vmatmul.mubr.f32.gmra.mrb[0].mxu0 %v667
        %v891 = vpop.f32.mrb[0].mxu0
        %v892 = vadd.f32 %v703, %v891
        %v893 = vpop.f32.mrb[0].mxu0
        %894 = vmatprep.mubr.f32.mxu0 0.0
        %895 = vmatmul.mubr.f32.gmra.mrb[0].mxu0 %v669
        %v896 = vpop.f32.mrb[0].mxu0
        %v897 = vadd.f32 %v703, %v896
        %v898 = vpop.f32.mrb[0].mxu0
        %899 = vmatprep.mubr.f32.mxu0 0.0
        %900 = vmatmul.mubr.f32.gmra.mrb[0].mxu0 %v671
        %v901 = vpop.f32.mrb[0].mxu0
        %v902 = vadd.f32 %v703, %v901
        %v903 = vpop.f32.mrb[0].mxu0
        %904 = vmatprep.mubr.f32.mxu0 0.0
        %905 = vmatmul.mubr.f32.gmra.mrb[0].mxu0 %v673
        %v906 = vpop.f32.mrb[0].mxu0
        %v907 = vadd.f32 %v703, %v906
        %v908 = vpop.f32.mrb[0].mxu0
        %909 = vmatprep.mubr.f32.mxu0 0.0
        %910 = vmatmul.mubr.f32.gmra.mrb[0].mxu0 %v675
        %v911 = vpop.f32.mrb[0].mxu0
        %v912 = vadd.f32 %v703, %v911
        %v913 = vpop.f32.mrb[0].mxu0
        %914 = vmatprep.mubr.f32.mxu0 0.0
        %915 = vmatmul.mubr.f32.gmra.mrb[0].mxu0 %v677
        %v916 = vpop.f32.mrb[0].mxu0
        %v917 = vadd.f32 %v703, %v916
        %v918 = vpop.f32.mrb[0].mxu0
        %919 = vmatprep.mubr.f32.mxu0 0.0
        %920 = vmatmul.mubr.f32.gmra.mrb[0].mxu0 %v679
        %v921 = vpop.f32.mrb[0].mxu0
        %v922 = vadd.f32 %v703, %v921
        %v923 = vpop.f32.mrb[0].mxu0
        %924 = vmatprep.mubr.f32.mxu0 0.0
        %925 = vmatmul.mubr.f32.gmra.mrb[0].mxu0 %v681
        %v926 = vpop.f32.mrb[0].mxu0
        %v927 = vadd.f32 %v703, %v926
        %v928 = vpop.f32.mrb[0].mxu0
        %929 = vdwg.mxu0
        %v930 = vadd.f32 %v772, %v274
        %v931 = vadd.f32 %v777, %v275
        %v932 = vadd.f32 %v782, %v276
        %v933 = vadd.f32 %v787, %v277
        %v934 = vadd.f32 %v792, %v278
        %v935 = vadd.f32 %v797, %v279
        %v936 = vadd.f32 %v802, %v280
        %v937 = vadd.f32 %v807, %v281
        %v938 = vadd.f32 %v812, %v282
        %v939 = vadd.f32 %v817, %v283
        %v940 = vadd.f32 %v822, %v284
        %v941 = vadd.f32 %v827, %v285
        %v942 = vadd.f32 %v832, %v286
        %v943 = vadd.f32 %v837, %v287
        %v944 = vadd.f32 %v842, %v288
        %v945 = vadd.f32 %v847, %v289
        %v946 = vadd.f32 %v852, %v290
        %v947 = vadd.f32 %v857, %v291
        %v948 = vadd.f32 %v862, %v292
        %v949 = vadd.f32 %v867, %v293
        %v950 = vadd.f32 %v872, %v294
        %v951 = vadd.f32 %v877, %v295
        %v952 = vadd.f32 %v882, %v296
        %v953 = vadd.f32 %v887, %v297
        %v954 = vadd.f32 %v892, %v298
        %v955 = vadd.f32 %v897, %v299
        %v956 = vadd.f32 %v902, %v300
        %v957 = vadd.f32 %v907, %v301
        %v958 = vadd.f32 %v912, %v302
        %v959 = vadd.f32 %v917, %v303
        %v960 = vadd.f32 %v922, %v304
        %v961 = vadd.f32 %v927, %v305
        %v962 = vmul.f32 %v930, -900.0
        %v963 = vmul.f32 %v931, -900.0
        %v964 = vmul.f32 %v932, -900.0
        %v965 = vmul.f32 %v933, -900.0
        %v966 = vmul.f32 %v934, -900.0
        %v967 = vmul.f32 %v935, -900.0
        %v968 = vmul.f32 %v936, -900.0
        %v969 = vmul.f32 %v937, -900.0
        %v970 = vmul.f32 %v938, -900.0
        %v971 = vmul.f32 %v939, -900.0
        %v972 = vmul.f32 %v940, -900.0
        %v973 = vmul.f32 %v941, -900.0
        %v974 = vmul.f32 %v942, -900.0
        %v975 = vmul.f32 %v943, -900.0
        %v976 = vmul.f32 %v944, -900.0
        %v977 = vmul.f32 %v945, -900.0
        %v978 = vmul.f32 %v946, -900.0
        %v979 = vmul.f32 %v947, -900.0
        %v980 = vmul.f32 %v948, -900.0
        %v981 = vmul.f32 %v949, -900.0
        %v982 = vmul.f32 %v950, -900.0
        %v983 = vmul.f32 %v951, -900.0
        %v984 = vmul.f32 %v952, -900.0
        %v985 = vmul.f32 %v953, -900.0
        %v986 = vmul.f32 %v954, -900.0
        %v987 = vmul.f32 %v955, -900.0
        %v988 = vmul.f32 %v956, -900.0
        %v989 = vmul.f32 %v957, -900.0
        %v990 = vmul.f32 %v958, -900.0
        %v991 = vmul.f32 %v959, -900.0
        %v992 = vmul.f32 %v960, -900.0
        %v993 = vmul.f32 %v961, -900.0
        %v994 = vmul.f32 %v962, %v930
        %v995 = vmul.f32 %v963, %v931
        %v996 = vmul.f32 %v964, %v932
        %v997 = vmul.f32 %v965, %v933
        %v998 = vmul.f32 %v966, %v934
        %v999 = vmul.f32 %v967, %v935
        %v1000 = vmul.f32 %v968, %v936
        %v1001 = vmul.f32 %v969, %v937
        %v1002 = vmul.f32 %v970, %v938
        %v1003 = vmul.f32 %v971, %v939
        %v1004 = vmul.f32 %v972, %v940
        %v1005 = vmul.f32 %v973, %v941
        %v1006 = vmul.f32 %v974, %v942
        %v1007 = vmul.f32 %v975, %v943
        %v1008 = vmul.f32 %v976, %v944
        %v1009 = vmul.f32 %v977, %v945
        %v1010 = vmul.f32 %v978, %v946
        %v1011 = vmul.f32 %v979, %v947
        %v1012 = vmul.f32 %v980, %v948
        %v1013 = vmul.f32 %v981, %v949
        %v1014 = vmul.f32 %v982, %v950
        %v1015 = vmul.f32 %v983, %v951
        %v1016 = vmul.f32 %v984, %v952
        %v1017 = vmul.f32 %v985, %v953
        %v1018 = vmul.f32 %v986, %v954
        %v1019 = vmul.f32 %v987, %v955
        %v1020 = vmul.f32 %v988, %v956
        %v1021 = vmul.f32 %v989, %v957
        %v1022 = vmul.f32 %v990, %v958
        %v1023 = vmul.f32 %v991, %v959
        %v1024 = vmul.f32 %v992, %v960
        %v1025 = vmul.f32 %v993, %v961
        %v1026 = vmul.f32 %v994, 1.442695
        %v1027 = vpow.pop %v1026
        %v1028 = vmul.f32 %v995, 1.442695
        %v1029 = vpow.pop %v1028
        %v1030 = vmul.f32 %v996, 1.442695
        %v1031 = vpow.pop %v1030
        %v1032 = vmul.f32 %v997, 1.442695
        %v1033 = vpow.pop %v1032
        %v1034 = vmul.f32 %v998, 1.442695
        %v1035 = vpow.pop %v1034
        %v1036 = vmul.f32 %v999, 1.442695
        %v1037 = vpow.pop %v1036
        %v1038 = vmul.f32 %v1000, 1.442695
        %v1039 = vpow.pop %v1038
        %v1040 = vmul.f32 %v1001, 1.442695
        %v1041 = vpow.pop %v1040
        %v1042 = vmul.f32 %v1002, 1.442695
        %v1043 = vpow.pop %v1042
        %v1044 = vmul.f32 %v1003, 1.442695
        %v1045 = vpow.pop %v1044
        %v1046 = vmul.f32 %v1004, 1.442695
        %v1047 = vpow.pop %v1046
        %v1048 = vmul.f32 %v1005, 1.442695
        %v1049 = vpow.pop %v1048
        %v1050 = vmul.f32 %v1006, 1.442695
        %v1051 = vpow.pop %v1050
        %v1052 = vmul.f32 %v1007, 1.442695
        %v1053 = vpow.pop %v1052
        %v1054 = vmul.f32 %v1008, 1.442695
        %v1055 = vpow.pop %v1054
        %v1056 = vmul.f32 %v1009, 1.442695
        %v1057 = vpow.pop %v1056
        %v1058 = vmul.f32 %v1010, 1.442695
        %v1059 = vpow.pop %v1058
        %v1060 = vmul.f32 %v1011, 1.442695
        %v1061 = vpow.pop %v1060
        %v1062 = vmul.f32 %v1012, 1.442695
        %v1063 = vpow.pop %v1062
        %v1064 = vmul.f32 %v1013, 1.442695
        %v1065 = vpow.pop %v1064
        %v1066 = vmul.f32 %v1014, 1.442695
        %v1067 = vpow.pop %v1066
        %v1068 = vmul.f32 %v1015, 1.442695
        %v1069 = vpow.pop %v1068
        %v1070 = vmul.f32 %v1016, 1.442695
        %v1071 = vpow.pop %v1070
        %v1072 = vmul.f32 %v1017, 1.442695
        %v1073 = vpow.pop %v1072
        %v1074 = vmul.f32 %v1018, 1.442695
        %v1075 = vpow.pop %v1074
        %v1076 = vmul.f32 %v1019, 1.442695
        %v1077 = vpow.pop %v1076
        %v1078 = vmul.f32 %v1020, 1.442695
        %v1079 = vpow.pop %v1078
        %v1080 = vmul.f32 %v1021, 1.442695
        %v1081 = vpow.pop %v1080
        %v1082 = vmul.f32 %v1022, 1.442695
        %v1083 = vpow.pop %v1082
        %v1084 = vmul.f32 %v1023, 1.442695
        %v1085 = vpow.pop %v1084
        %v1086 = vmul.f32 %v1024, 1.442695
        %v1087 = vpow.pop %v1086
        %v1088 = vmul.f32 %v1025, 1.442695
        %v1089 = vpow.pop %v1088
        %1090 = vst [vmem:[%s271] sm:$0xff] %v1027
        %1091 = vst [vmem:[%s271 + $0x8] sm:$0xff] %v1029
        %1092 = vst [vmem:[%s271 + $0x10] sm:$0xff] %v1031
        %1093 = vst [vmem:[%s271 + $0x18] sm:$0xff] %v1033
        %1094 = vst [vmem:[%s271 + $0x20] sm:$0xff] %v1035
        %1095 = vst [vmem:[%s271 + $0x28] sm:$0xff] %v1037
        %1096 = vst [vmem:[%s271 + $0x30] sm:$0xff] %v1039
        %1097 = vst [vmem:[%s271 + $0x38] sm:$0xff] %v1041
        %1098 = vst [vmem:[%s271 + $0x40] sm:$0xff] %v1043
        %1099 = vst [vmem:[%s271 + $0x48] sm:$0xff] %v1045
        %1100 = vst [vmem:[%s271 + $0x50] sm:$0xff] %v1047
        %1101 = vst [vmem:[%s271 + $0x58] sm:$0xff] %v1049
        %1102 = vst [vmem:[%s271 + $0x60] sm:$0xff] %v1051
        %1103 = vst [vmem:[%s271 + $0x68] sm:$0xff] %v1053
        %1104 = vst [vmem:[%s271 + $0x70] sm:$0xff] %v1055
        %1105 = vst [vmem:[%s271 + $0x78] sm:$0xff] %v1057
        %1106 = vst [vmem:[%s271 + $0x80] sm:$0xff] %v1059
        %1107 = vst [vmem:[%s271 + $0x88] sm:$0xff] %v1061
        %1108 = vst [vmem:[%s271 + $0x90] sm:$0xff] %v1063
        %1109 = vst [vmem:[%s271 + $0x98] sm:$0xff] %v1065
        %1110 = vst [vmem:[%s271 + $0xa0] sm:$0xff] %v1067
        %1111 = vst [vmem:[%s271 + $0xa8] sm:$0xff] %v1069
        %1112 = vst [vmem:[%s271 + $0xb0] sm:$0xff] %v1071
        %1113 = vst [vmem:[%s271 + $0xb8] sm:$0xff] %v1073
        %1114 = vst [vmem:[%s271 + $0xc0] sm:$0xff] %v1075
        %1115 = vst [vmem:[%s271 + $0xc8] sm:$0xff] %v1077
        %1116 = vst [vmem:[%s271 + $0xd0] sm:$0xff] %v1079
        %1117 = vst [vmem:[%s271 + $0xd8] sm:$0xff] %v1081
        %1118 = vst [vmem:[%s271 + $0xe0] sm:$0xff] %v1083
        %1119 = vst [vmem:[%s271 + $0xe8] sm:$0xff] %v1085
        %1120 = vst [vmem:[%s271 + $0xf0] sm:$0xff] %v1087
        %1121 = vst [vmem:[%s271 + $0xf8] sm:$0xff] %v1089
        %s1122 = sand.u32 %s141, 1
        %s1123 = scalar_lea.sflag [#allocation4], %s1122
        %s1124 = sand.u32 %s141, 1
        %s1125 = smul.addr %s1124, 256
        %s1126 = scalar_lea.vmem [#allocation8], %s1125
        // Predicated region
        $region53: #{tpu_custom_call.1} parent=39 // pred_check
          %p1127 = pneg %p151
        $region54: #{tpu_custom_call.1} parent=39 // pred_check_branch
          %1129 = sbr.rel (%p1127) target = $region56
        $region55: #{tpu_custom_call.1} parent=39 // pred_region
          %s1130 = smul.u32 32, %s23
          %s1132 = ssub.s32 4096, 4096
          %1133 = vsyncadd %s1123, %s1132
          %s1134 = smul.addr %s1130, 128
          %s1135 = scalar_lea.hbm %s5, %s1134
          %s1136 = sshll.u32 %s1126, 4
          %s1137 = int_to_ptr.vmem [resolvable:$true] %s1136
          %1142 = dma.vmem_to_hbm [thread:$0]  %s1137, 4096, %s1135, %s1123, 128, 128, 8
        $region56: #{tpu_custom_call.1} parent=39 // pred_fallthru
          _
      $region40: #{tpu_custom_call.1} parent=5 // pred_fallthru
        _
      %p1143 = scmp.le.s32.totalorder 2, %s18
      // Predicated region
      $region57: #{tpu_custom_call.1} parent=5 // pred_check
        %p1144 = pneg %p1143
      $region58: #{tpu_custom_call.1} parent=5 // pred_check_branch
        %1146 = sbr.rel (%p1144) target = $region60
      $region59: #{tpu_custom_call.1} parent=5 // pred_region
        %s1147 = ssub.s32 %s18, 2
        // Predicated region
        $region61: #{tpu_custom_call.1} parent=59 // pred_check
          %p1148 = pneg %p157
        $region62: #{tpu_custom_call.1} parent=59 // pred_check_branch
          %1150 = sbr.rel (%p1148) target = $region64
        $region63: #{tpu_custom_call.1} parent=59 // pred_region
          %s1151 = sand.u32 %s142, 1
          %s1152 = scalar_lea.sflag [#allocation4], %s1151
          %s1153 = sand.u32 %s142, 1
          %s1154 = smul.addr %s1153, 256
          %s1155 = scalar_lea.vmem [#allocation8], %s1154
          %1156 = dma.done %s1152, 4096
        $region64: #{tpu_custom_call.1} parent=59 // pred_fallthru
          _
      $region60: #{tpu_custom_call.1} parent=5 // pred_fallthru
        _
    $region6: #{tpu_custom_call.1} parent=1 // loop_footer
      %s22 = sadd.s32 1, %s18
    $region7: #{tpu_custom_call.1} parent=1 // loop_footer_branch
      %17 = sbr.rel target = $region3
    $region8: #{tpu_custom_call.1} parent=1 // loop_exit
      _
    %1157 = vsyncpa [#allocation3], 1
    %s1158 = scalar_lea.sflag [#allocation3], 1
    %1159 = vsyncpa %s1158, 1
    %1160 = vsyncpa [#allocation6], 1
    %1161 = vsyncpa [#allocation4], 1
    %s1162 = scalar_lea.sflag [#allocation4], 1
    %1163 = vsyncpa %s1162, 1

</llo_original>
